<compile_context>
chip_gen: v5e
topology: v5e:2x2
jax: 0.10.0
libtpu: 0.0.40
codegen_flags: <defaults>
</compile_context>

<pallas_src>
import functools
import math

import jax
import jax.numpy as jnp
from jax.experimental import pallas as pl
from jax.experimental.pallas import tpu as pltpu


def _apply_dropout(y, seed_ref, p):
    """In-kernel inverted dropout using the TPU hardware PRNG (training only)."""
    keep_prob = 1.0 - p
    # Unique seed per grid step -> steps are independent ("parallel" is safe).
    step = pl.program_id(0) * pl.num_programs(1) + pl.program_id(1)
    pltpu.prng_seed(seed_ref[0] + step)
    bits = pltpu.bitcast(pltpu.prng_random_bits(y.shape), jnp.uint32)
    thresh = jnp.uint32(min(int(keep_prob * (1 << 32)), (1 << 32) - 1))
    keep = bits < thresh
    return jnp.where(keep, y * (1.0 / keep_prob), 0.0)


def _pe_kernel_wide(seed_ref, x_ref, o_ref, *, emb_size, row_tile, p, training):
    """Lane-dense E (E % 128 == 0). x_ref/o_ref: (TR, E), one batch elem, one S-tile."""
    TR, E = x_ref.shape
    j = pl.program_id(1)

    # Positions for this sequence tile: (TR, 1) -> only O(TR) transcendentals.
    pos = (jax.lax.broadcasted_iota(jnp.int32, (TR, 1), 0) + j * row_tile
           ).astype(jnp.float32)
    angle = pos * jnp.float32(emb_size)          # reference quirk: position * embedding_size
    sin_a = jnp.sin(angle)                       # (TR, 1)
    cos_a = jnp.cos(angle)                       # (TR, 1)

    parity_even = (jax.lax.broadcasted_iota(jnp.int32, (1, E), 1) & 1) == 0  # (1, E)
    pe = jnp.where(parity_even, sin_a, cos_a)    # broadcast -> (TR, E)

    y = x_ref[...].astype(jnp.float32) + pe
    if training and p > 0.0:
        y = _apply_dropout(y, seed_ref, p)
    o_ref[...] = y.astype(o_ref.dtype)


def _pe_kernel_folded(seed_ref, x_ref, o_ref, *, emb_size, group, row_tile, p, training):
    """Small-E layout: G consecutive positions folded into the lane dim.

    x_ref/o_ref: (TR, G*E); element (r, l) is original (row*G + l // E, l % E).
    """
    TR, GE = x_ref.shape
    j = pl.program_id(1)

    lane = jax.lax.broadcasted_iota(jnp.int32, (1, GE), 1)                    # (1, GE)
    # lane // E computed in f32 (exact for lane < 2^23, E even) to avoid vector int-div.
    grp = jnp.floor((lane.astype(jnp.float32) + 0.5) * (1.0 / emb_size))      # (1, GE)
    row = (jax.lax.broadcasted_iota(jnp.int32, (TR, 1), 0) + j * row_tile
           ).astype(jnp.float32)                                              # (TR, 1)
    pos = row * jnp.float32(group) + grp                                      # (TR, GE)
    angle = pos * jnp.float32(emb_size)

    parity_even = (lane & 1) == 0                                             # (1, GE)
    pe = jnp.where(parity_even, jnp.sin(angle), jnp.cos(angle))               # (TR, GE)

    y = x_ref[...].astype(jnp.float32) + pe
    if training and p > 0.0:
        y = _apply_dropout(y, seed_ref, p)
    o_ref[...] = y.astype(o_ref.dtype)


def positional_encoding(x, *, dropout_p=0.1, training=False, seed=0, max_len=5000):
    """x: (batch, seq, embedding). Returns x + PE[:seq] (with dropout if training)."""
    B, S, E = x.shape
    assert S <= max_len, "sequence length exceeds max_len"
    assert E % 2 == 0, "embedding_size must be even"

    # ---- choose layout: lane-dense E, or fold G positions into the lane dim ----
    g = math.lcm(E, 128) // E
    use_fold = (E % 128 != 0) and (g > 1) and (S % g == 0)
    if use_fold:
        xk = x.reshape(B, S // g, g * E)
        rows, cols = S // g, g * E
        kernel = functools.partial(_pe_kernel_folded, emb_size=E, group=g,
                                   p=float(dropout_p), training=bool(training))
    else:
        xk = x
        rows, cols = S, E
        kernel = functools.partial(_pe_kernel_wide, emb_size=E,
                                   p=float(dropout_p), training=bool(training))

    # ---- tile the row (sequence) axis so in+out double buffers stay small ----
    TARGET_TILE_BYTES = 2 * 1024 * 1024          # per buffer; ~8 MiB total with 2x2 buffering
    bytes_per_row = cols * jnp.dtype(x.dtype).itemsize
    tr = TARGET_TILE_BYTES // max(1, bytes_per_row)
    if tr >= rows:
        tr = rows                                 # full extent (always legal)
    else:
        tr = max(8, (tr // 8) * 8)                # sublane-aligned tile
    grid = (B, pl.cdiv(rows, tr))

    if use_fold:
        kernel = functools.partial(kernel, row_tile=tr)
    else:
        kernel = functools.partial(kernel, row_tile=tr)

    seed_arr = jnp.array([seed], dtype=jnp.int32)

    out = pl.pallas_call(
        kernel,
        out_shape=jax.ShapeDtypeStruct((B, rows, cols), x.dtype),
        grid_spec=pltpu.PrefetchScalarGridSpec(
            num_scalar_prefetch=1,               # seed lives in SMEM
            grid=grid,
            in_specs=[pl.BlockSpec((None, tr, cols), lambda b, j, seed: (b, j, 0))],
            out_specs=pl.BlockSpec((None, tr, cols), lambda b, j, seed: (b, j, 0)),
        ),
        compiler_params=pltpu.CompilerParams(
            dimension_semantics=("parallel", "parallel"),
            vmem_limit_bytes=32 * 1024 * 1024,
        ),
    )(seed_arr, xk)

    if use_fold:
        out = out.reshape(B, S, E)
    return out


def _reference(x):
    """Plain-JAX replica of the PyTorch module (eval mode) for verification."""
    B, S, E = x.shape
    position = jnp.arange(S, dtype=jnp.float32)[:, None]
    pe = jnp.zeros((S, E), dtype=jnp.float32)
    pe = pe.at[:, 0::2].set(jnp.sin(position * E))
    pe = pe.at[:, 1::2].set(jnp.cos(position * E))
    return x + pe[None, :, :]


if __name__ == "__main__":
    key = jax.random.PRNGKey(0)
    k0, k1 = jax.random.split(key)

    # Small-E case (E=32 -> folded lane-dense layout, last dim 128).
    B, S, E = 2, 8, 32
    x = jax.random.normal(k0, (B, S, E), dtype=jnp.float32)
    out = jax.block_until_ready(positional_encoding(x, dropout_p=0.1, training=False))
    assert out.shape == x.shape and out.dtype == x.dtype
    assert jnp.allclose(out, _reference(x), atol=2e-3, rtol=2e-3), "mismatch (folded path)"

    # Lane-dense-E case (E=128 -> per-position sin/cos path).
    B2, S2, E2 = 2, 16, 128
    x2 = jax.random.normal(k1, (B2, S2, E2), dtype=jnp.float32)
    out2 = jax.block_until_ready(positional_encoding(x2, dropout_p=0.1, training=False))
    assert out2.shape == x2.shape and out2.dtype == x2.dtype
    assert jnp.allclose(out2, _reference(x2), atol=2e-3, rtol=2e-3), "mismatch (wide path)"

    # NOTE: training-mode dropout (pltpu.prng_* hardware PRNG) is implemented but
    # not exercised here; nn.Dropout is identity in eval mode, which is what is
    # verified above. The hardware PRNG has no CPU/interpret-mode lowering.
    print("KERNEL_OK")
</pallas_src>

<mosaic_0001>
module attributes {stable_mosaic.version = 11 : i64} {
  func.func @_pe_kernel_folded(%arg0: i32, %arg1: i32, %arg2: memref<1xi32, #tpu.memory_space<smem>>, %arg3: memref<1x2x128xf32, #tpu.memory_space<vmem>>, %arg4: memref<1x2x128xf32, #tpu.memory_space<vmem>>) attributes {dimension_semantics = [#tpu.dimension_semantics<parallel>, #tpu.dimension_semantics<parallel>], iteration_bounds = array<i64: 2, 1>, scalar_prefetch = 1 : i64, scratch_operands = 0 : i64, tpu.core_type = #tpu.core_type<tc>, window_params = [{transform_indices = @transform_0, window_bounds = array<i64: 1, 2, 128>}, {transform_indices = @transform_1, window_bounds = array<i64: 1, 2, 128>}]} {
    %0 = tpu.iota {dimensions = array<i32: 1>} : vector<1x128xi32>
    %1 = arith.sitofp %0 : vector<1x128xi32> to vector<1x128xf32>
    %cst = arith.constant 5.000000e-01 : f32
    %2 = vector.broadcast %cst : f32 to vector<1x128xf32>
    %3 = arith.addf %1, %2 : vector<1x128xf32>
    %cst_0 = arith.constant 3.125000e-02 : f32
    %4 = vector.broadcast %cst_0 : f32 to vector<1x128xf32>
    %5 = arith.mulf %3, %4 : vector<1x128xf32>
    %6 = math.floor %5 : vector<1x128xf32>
    %7 = tpu.iota {dimensions = array<i32: 0>} : vector<2x1xi32>
    %c2_i32 = arith.constant 2 : i32
    %8 = arith.muli %arg1, %c2_i32 : i32
    %9 = vector.broadcast %8 : i32 to vector<2x1xi32>
    %10 = arith.addi %7, %9 : vector<2x1xi32>
    %11 = arith.sitofp %10 : vector<2x1xi32> to vector<2x1xf32>
    %cst_1 = arith.constant 4.000000e+00 : f32
    %12 = vector.broadcast %cst_1 : f32 to vector<2x1xf32>
    %13 = arith.mulf %11, %12 : vector<2x1xf32>
    %14 = vector.broadcast %13 : vector<2x1xf32> to vector<2x128xf32>
    %15 = vector.broadcast %6 : vector<1x128xf32> to vector<2x128xf32>
    %16 = arith.addf %14, %15 : vector<2x128xf32>
    %cst_2 = arith.constant 3.200000e+01 : f32
    %17 = vector.broadcast %cst_2 : f32 to vector<2x128xf32>
    %18 = arith.mulf %16, %17 : vector<2x128xf32>
    %c1_i32 = arith.constant 1 : i32
    %19 = vector.broadcast %c1_i32 : i32 to vector<1x128xi32>
    %20 = arith.andi %0, %19 : vector<1x128xi32>
    %c0_i32 = arith.constant 0 : i32
    %21 = vector.broadcast %c0_i32 : i32 to vector<1x128xi32>
    %22 = arith.cmpi eq, %20, %21 : vector<1x128xi32>
    %23 = math.sin %18 : vector<2x128xf32>
    %24 = math.cos %18 : vector<2x128xf32>
    %25 = vector.shape_cast %22 : vector<1x128xi1> to vector<1x128xi1>
    %26 = vector.broadcast %25 : vector<1x128xi1> to vector<2x128xi1>
    %27 = arith.select %26, %23, %24 : vector<2x128xi1>, vector<2x128xf32>
    %c0 = arith.constant 0 : index
    %c0_3 = arith.constant 0 : index
    %c0_4 = arith.constant 0 : index
    %28 = vector.load %arg3[%c0, %c0_3, %c0_4] : memref<1x2x128xf32, #tpu.memory_space<vmem>>, vector<1x2x128xf32>
    %29 = vector.shape_cast %28 : vector<1x2x128xf32> to vector<2x128xf32>
    %30 = arith.addf %29, %27 : vector<2x128xf32>
    %c0_5 = arith.constant 0 : index
    %c0_6 = arith.constant 0 : index
    %c0_7 = arith.constant 0 : index
    %31 = vector.load %arg4[%c0_5, %c0_6, %c0_7] : memref<1x2x128xf32, #tpu.memory_space<vmem>>, vector<1x2x128xf32>
    %32 = vector.shape_cast %31 : vector<1x2x128xf32> to vector<2x128xf32>
    %33 = vector.shape_cast %30 : vector<2x128xf32> to vector<1x2x128xf32>
    tpu.vector_store %arg4[%c0_5, %c0_6, %c0_7], %33 {strides = array<i32>} : memref<1x2x128xf32, #tpu.memory_space<vmem>>, vector<1x2x128xf32>,
    return
  }
  func.func @transform_0(%arg0: i32, %arg1: i32, %arg2: memref<1xi32, #tpu.memory_space<smem>>) -> (i32, i32, i32) {
    %c0_i32 = arith.constant 0 : i32
    %c0_i32_0 = arith.constant 0 : i32
    return %arg0, %arg1, %c0_i32 : i32, i32, i32
  }
  func.func @transform_1(%arg0: i32, %arg1: i32, %arg2: memref<1xi32, #tpu.memory_space<smem>>) -> (i32, i32, i32) {
    %c0_i32 = arith.constant 0 : i32
    %c0_i32_0 = arith.constant 0 : i32
    return %arg0, %arg1, %c0_i32 : i32, i32, i32
  }
}

</mosaic_0001>

<llo_original>
// kernel: tpu_custom_call.1
$region0: #{tpu_custom_call.1}
  #allocation0 [shape = 'u32[]', space=smem, size = 0x4, offset = 0x4, fixed_abs, tag = 'smem constant byte address 0x4 - core index']
  #allocation1 [shape = 'u32[72,128]{1,0:T(1,128)}', space=vmem, size = 0x9000, scoped, tag = 'internal scratch']
  #allocation2 [shape = 's32[1]{0}', space=sflag, size = 0x4, scoped, tag = 'scoped memory for tpu_custom_call.1']
  #allocation3 [shape = 's32[1]{0:T(128)S(6)}', space=smem, size = 0x200, scoped, tag = 'prefetched SMEM operand 0']
  %s0 = inlined_call_operand.<no memory space> [shape: s32[1], index: 0, kind: input, shape index: {}]
  %s1 = inlined_call_operand.hbm [shape: f32[2,2,128], index: 1, kind: input, shape index: {}]
  %s2 = inlined_call_operand.hbm [shape: f32[2,2,128], index: 2, kind: output, shape index: {}]
  %s3 = sld [smem:[#allocation0]]
  $region41: #{tpu_custom_call.1} parent=0
    _
  %s5 = ssub.s32 1, %s3
  %s6 = scalar_select 0, %s5, %s3
  %7 = sst [smem:[#allocation3]] %s0
  $region1: #{tpu_custom_call.1} parent=0
    #allocation4 [shape = 'u8[2048]{0}', space=vmem, size = 0x800, scoped, tag = 'input window, operand 1']
    #allocation5 [shape = 's32[2]{0}', space=sflag, size = 0x8, scoped, tag = 'scoped memory for tpu_custom_call.1']
    #allocation6 [shape = 's32[2]{0}', space=sflag, size = 0x8, scoped, tag = 'scoped memory for tpu_custom_call.1']
    #allocation7 [shape = 'u8[2048]{0}', space=vmem, size = 0x800, scoped, tag = 'output window, operand 0']
    %8 = vsyncpa [#allocation5], 0
    %s9 = scalar_lea.sflag [#allocation5], 1
    %10 = vsyncpa %s9, 0
    %11 = vsyncpa [#allocation6], 0
    %s12 = scalar_lea.sflag [#allocation6], 1
    %13 = vsyncpa %s12, 0
    loop: start=0, step=1, limit=4
    $region2: #{tpu_custom_call.1} parent=1 // loop_pre_header
      _
    $region3: #{tpu_custom_call.1} parent=1 // loop_header
      %s15 = sphi 0, %s19
      %p16 = scmp.ge.s32.totalorder %s15, 4
      %s22 = sphi 0, %s34
      %s23 = sphi 0, %s30
      %s24 = sphi 0, %s22
      %s25 = sphi 0, %s23
      %s26 = sphi 0, %s24
      %s27 = sphi 0, %s25
      %s39 = sphi 0, %s41
      %s42 = sphi 0, %s39
      %s43 = sphi 0, %s42
      %s59 = sphi 0, %s43
      %s67 = sphi 0, %s69
      %s70 = sphi 0, %s67
      %s71 = sphi 0, %s70
      %s87 = sphi 0, %s71
    $region4: #{tpu_custom_call.1} parent=1 // loop_header_branch
      %18 = sbr.rel (%p16) target = $region8
    $region5: #{tpu_custom_call.1} parent=1 // loop_body
      %s20 = ssub.s32 %s15, 1
      %s21 = ssub.s32 %s15, 2
      %s28 = sadd.s32 1, %s23
      %p29 = scmp.ge.s32.totalorder %s28, 1
      %s30 = scalar_select %p29, 0, %s28
      %s31 = sadd.s32 1, %s22
      %s32 = scalar_select %p29, %s31, %s22
      %p33 = scmp.ge.s32.totalorder %s32, 2
      %s34 = scalar_select %p33, 0, %s32
      %s35 = ssub.s32 %s22, %s34
      %s36 = ssub.s32 %s23, %s30
      %s37 = sor.u32 %s35, %s36
      %p38 = scmp.eq.s32.totalorder %s37, 0
      %s40 = sadd.s32 %s39, 1
      %s41 = scalar_select %p38, %s39, %s40
      %p44 = pneg %p38
      %p45 = scmp.eq.s32.totalorder %s15, 1
      %p46 = por %p44, %p45
      %p47 = scmp.ne.s32.totalorder %s39, %s42
      %p48 = scmp.eq.s32.totalorder %s15, 0
      %p49 = por %p47, %p48
      %p50 = scmp.ne.s32.totalorder %s39, %s42
      %p51 = scmp.eq.s32.totalorder %s20, 1
      %p52 = por %p50, %p51
      %p53 = scmp.ne.s32.totalorder %s42, %s43
      %p54 = scmp.eq.s32.totalorder %s20, 0
      %p55 = por %p53, %p54
      %p56 = scmp.ne.s32.totalorder %s42, %s43
      %p57 = scmp.eq.s32.totalorder %s21, 1
      %p58 = por %p56, %p57
      %p60 = scmp.ne.s32.totalorder %s43, %s59
      %p61 = scmp.eq.s32.totalorder %s21, 0
      %p62 = por %p60, %p61
      %s63 = ssub.s32 %s22, %s34
      %s64 = ssub.s32 %s23, %s30
      %s65 = sor.u32 %s63, %s64
      %p66 = scmp.eq.s32.totalorder %s65, 0
      %s68 = sadd.s32 %s67, 1
      %s69 = scalar_select %p66, %s67, %s68
      %p72 = pneg %p66
      %p73 = scmp.eq.s32.totalorder %s15, 1
      %p74 = por %p72, %p73
      %p75 = scmp.ne.s32.totalorder %s67, %s70
      %p76 = scmp.eq.s32.totalorder %s15, 0
      %p77 = por %p75, %p76
      %p78 = scmp.ne.s32.totalorder %s67, %s70
      %p79 = scmp.eq.s32.totalorder %s20, 1
      %p80 = por %p78, %p79
      %p81 = scmp.ne.s32.totalorder %s70, %s71
      %p82 = scmp.eq.s32.totalorder %s20, 0
      %p83 = por %p81, %p82
      %p84 = scmp.ne.s32.totalorder %s70, %s71
      %p85 = scmp.eq.s32.totalorder %s21, 1
      %p86 = por %p84, %p85
      %p88 = scmp.ne.s32.totalorder %s71, %s87
      %p89 = scmp.eq.s32.totalorder %s21, 0
      %p90 = por %p88, %p89
      %p91 = scmp.le.s32.totalorder 1, %s15
      %p92 = scmp.lt.s32.totalorder %s15, 3
      %p93 = pnand %p91, %p92
      %p94 = pneg %p93
      // Predicated region
      $region9: #{tpu_custom_call.1} parent=5 // pred_check
        _
      $region10: #{tpu_custom_call.1} parent=5 // pred_check_branch
        %96 = sbr.rel (%p93) target = $region12
      $region11: #{tpu_custom_call.1} parent=5 // pred_region
        %s97 = ssub.s32 %s15, 1
      $region12: #{tpu_custom_call.1} parent=5 // pred_fallthru
        _
      %p98 = scmp.lt.s32.totalorder %s15, 2
      // Predicated region
      $region13: #{tpu_custom_call.1} parent=5 // pred_check
        %p99 = pneg %p98
      $region14: #{tpu_custom_call.1} parent=5 // pred_check_branch
        %101 = sbr.rel (%p99) target = $region16
      $region15: #{tpu_custom_call.1} parent=5 // pred_region
        // Predicated region
        $region17: #{tpu_custom_call.1} parent=15 // pred_check
          %p102 = pneg %p49
        $region18: #{tpu_custom_call.1} parent=15 // pred_check_branch
          %104 = sbr.rel (%p102) target = $region20
        $region19: #{tpu_custom_call.1} parent=15 // pred_region
          %s105 = sand.u32 %s39, 1
          %s106 = scalar_lea.sflag [#allocation5], %s105
          %s107 = sand.u32 %s39, 1
          %s108 = smul.addr %s107, 2
          %s109 = scalar_lea.vmem [#allocation4], %s108
          %111 = vsyncadd %s106, 0
          %s112 = sadd.s32 %s23, %s22
          %s113 = smul.addr %s112, 2
          %s114 = scalar_lea.hbm %s1, %s113
          %s116 = sshll.u32 %s114, 4
          %s117 = int_to_ptr.hbm [resolvable:$true] %s116
          %s118 = sshll.u32 %s109, 4
          %s119 = int_to_ptr.vmem [resolvable:$true] %s118
          %121 = dma.hbm_to_vmem [thread:$0]  %s117, 32, %s119, %s106
        $region20: #{tpu_custom_call.1} parent=15 // pred_fallthru
          _
      $region16: #{tpu_custom_call.1} parent=5 // pred_fallthru
        _
      %p122 = scmp.le.s32.totalorder 1, %s15
      %p123 = scmp.lt.s32.totalorder %s15, 3
      %p124 = pnand %p122, %p123
      %p125 = pneg %p124
      // Predicated region
      $region21: #{tpu_custom_call.1} parent=5 // pred_check
        _
      $region22: #{tpu_custom_call.1} parent=5 // pred_check_branch
        %127 = sbr.rel (%p124) target = $region24
      $region23: #{tpu_custom_call.1} parent=5 // pred_region
        %s128 = ssub.s32 %s15, 1
        %s129 = sand.u32 %s42, 1
        %s130 = scalar_lea.sflag [#allocation5], %s129
        %s131 = sand.u32 %s42, 1
        %s132 = smul.addr %s131, 2
        %s133 = scalar_lea.vmem [#allocation4], %s132
        // Predicated region
        $region25: #{tpu_custom_call.1} parent=23 // pred_check
          %p134 = pneg %p55
        $region26: #{tpu_custom_call.1} parent=23 // pred_check_branch
          %136 = sbr.rel (%p134) target = $region28
        $region27: #{tpu_custom_call.1} parent=23 // pred_region
          %138 = dma.done %s130, 32
        $region28: #{tpu_custom_call.1} parent=23 // pred_fallthru
          _
        %s139 = sand.u32 %s42, 1
        %s140 = scalar_lea.sflag [#allocation5], %s139
        %s141 = sand.u32 %s42, 1
        %s142 = smul.addr %s141, 2
        %s143 = scalar_lea.vmem [#allocation4], %s142
        %p144 = pneg %p55
        %p145 = pneg %p52
        %p146 = pneg %p83
        %p147 = pneg %p80
        %s148 = sand.u32 %s70, 1
        %s149 = scalar_lea.sflag [#allocation6], %s148
        %s150 = sand.u32 %s70, 1
        %s151 = smul.addr %s150, 2
        %s152 = scalar_lea.vmem [#allocation7], %s151
        %v153 = vlaneseq
        %v154 = vand.u32 %v153, 127
        %v155 = vcvt.s32.f32 %v154
        %v156 = vadd.f32 %v155, 0.5
        %v157 = vmul.f32 %v156, 0.03125
        %v158 = vfloor.f32 %v157
        %v159 = vlaneseq
        %v160 = vshrl.u32 %v159, 7
        %s161 = smul.u32 %s25, 2
        %v162 = vstv %s161
        %v163 = vadd.s32 %v160, %v162
        %v164 = vcvt.s32.f32 %v163
        %v165 = vmul.f32 %v164, 4.0
        %v166 = vadd.f32 %v165, %v158
        %v167 = vmul.f32 %v166, 32.0
        %v168 = vand.u32 %v154, 1
        %vm169 = vcmp.eq.s32.totalorder %v168, 0
        %v170 = vand.u32 2147483647, %v167
        %vm171 = vcmp.le.f32.partialorder %v170, 0.7853982
        %vm172 = vcmp.lt.s32.totalorder %v167, 0
        %v173 = vand.u32 %v167, 2139095040
        %v174 = vshrl.u32 %v173, 23
        %v175 = vsub.s32 %v174, 127
        %v176 = vand.u32 2147483647, %v167
        %v177 = vand.u32 %v176, 8388607
        %v178 = vor.u32 %v177, 8388608
        %v179 = vsub.s32 0, %v178
        %v180 = vadd.s32 %v175, 1
        %vm181 = vcmp.gt.s32.totalorder %v180, 0
        %v182 = vsel %vm181, %v180, 0
        %v183 = vshrl.u32 %v182, 5
        %v184 = vand.u32 %v182, 31
        %v185 = vsub.s32 32, %v184
        %v186 = vshrl.u32 683565275, %v185
        %v187 = vshll.u32 683565275, %v184
        %v188 = vshrl.u32 2475754826, %v185
        %v189 = vor.u32 %v187, %v188
        %v190 = vshll.u32 2475754826, %v184
        %v191 = vshrl.u32 2131351028, %v185
        %v192 = vor.u32 %v190, %v191
        %v193 = vshll.u32 2131351028, %v184
        %v194 = vshrl.u32 2102212464, %v185
        %v195 = vor.u32 %v193, %v194
        %v196 = vshll.u32 2102212464, %v184
        %v197 = vshrl.u32 920167782, %v185
        %v198 = vor.u32 %v196, %v197
        %v199 = vshll.u32 920167782, %v184
        %v200 = vshrl.u32 1326507024, %v185
        %v201 = vor.u32 %v199, %v200
        %vm202 = vcmp.lt.s32.totalorder %v183, 1
        %vm203 = vcmp.lt.s32.totalorder %v183, 2
        %vm204 = vcmp.lt.s32.totalorder %v183, 3
        %vm205 = vcmp.lt.s32.totalorder %v183, 4
        %v206 = vsel %vm202, %v186, %v189
        %v207 = vsel %vm205, %v195, 2102212464
        %v208 = vsel %vm204, %v192, %v207
        %v209 = vsel %vm203, %v206, %v208
        %v210 = vsel %vm202, %v189, %v192
        %v211 = vsel %vm205, %v198, 920167782
        %v212 = vsel %vm204, %v195, %v211
        %v213 = vsel %vm203, %v210, %v212
        %v214 = vsel %vm202, %v192, %v195
        %v215 = vsel %vm205, %v201, 1326507024
        %v216 = vsel %vm204, %v198, %v215
        %v217 = vsel %vm203, %v214, %v216
        %v218 = vshll.u32 %v178, 8
        %v219 = vand.u32 %v218, 65535
        %v220 = vshrl.u32 %v218, 16
        %v221 = vand.u32 %v217, 65535
        %v222 = vshrl.u32 %v217, 16
        %v223 = vmul.u32 %v219, %v221
        %v224 = vmul.u32 %v219, %v222
        %v225 = vmul.u32 %v220, %v221
        %v226 = vmul.u32 %v220, %v222
        %v227 = vshll.u32 %v224, 16
        %v228 = vshrl.u32 %v224, 16
        %v229 = vshll.u32 %v225, 16
        %v230 = vshrl.u32 %v225, 16
        %vm231 = vc.u32 %v223, %v227
        %v232 = vsel %vm231, 1, 0
        %v233 = vadd.s32 %v223, %v227
        %v234 = vadd.s32 %v226, %v232
        %vm235 = vc.u32 %v233, %v229
        %v236 = vsel %vm235, 1, 0
        %v237 = vadd.s32 %v233, %v229
        %v238 = vadd.s32 %v234, %v236
        %v239 = vadd.s32 %v238, %v228
        %v240 = vadd.s32 %v239, %v230
        %v241 = vand.u32 %v218, 65535
        %v242 = vshrl.u32 %v218, 16
        %v243 = vand.u32 %v213, 65535
        %v244 = vshrl.u32 %v213, 16
        %v245 = vmul.u32 %v241, %v243
        %v246 = vmul.u32 %v241, %v244
        %v247 = vmul.u32 %v242, %v243
        %v248 = vmul.u32 %v242, %v244
        %v249 = vshll.u32 %v246, 16
        %v250 = vshrl.u32 %v246, 16
        %v251 = vshll.u32 %v247, 16
        %v252 = vshrl.u32 %v247, 16
        %vm253 = vc.u32 %v245, %v249
        %v254 = vsel %vm253, 1, 0
        %v255 = vadd.s32 %v245, %v249
        %v256 = vadd.s32 %v248, %v254
        %vm257 = vc.u32 %v255, %v251
        %v258 = vsel %vm257, 1, 0
        %v259 = vadd.s32 %v255, %v251
        %v260 = vadd.s32 %v256, %v258
        %v261 = vadd.s32 %v260, %v250
        %v262 = vadd.s32 %v261, %v252
        %v263 = vmul.u32 %v218, %v209
        %v264 = vadd.s32 %v240, %v259
        %vm265 = vc.u32 %v240, %v259
        %v266 = vadd.s32 %v262, 1
        %v267 = vsel %vm265, %v266, %v262
        %v268 = vadd.s32 %v263, %v267
        %v269 = vadd.s32 %v268, 536870912
        %v270 = vshrl.u32 %v269, 30
        %v271 = vshll.u32 %v270, 30
        %v272 = vsub.s32 %v268, %v271
        %vm273 = vcmp.lt.s32.totalorder %v272, 0
        %v274 = vsub.s32 0, %v272
        %v275 = vsel %vm273, %v274, %v272
        %v276 = vclz %v275
        %v277 = vsub.s32 %v276, 2
        %vm278 = vcmp.gt.s32.totalorder 0, %v277
        %v279 = vsel %vm278, 0, %v277
        %v280 = vsub.s32 32, %v279
        %v281 = vshll.u32 %v272, %v279
        %v282 = vshrl.u32 %v264, %v280
        %v283 = vor.u32 %v281, %v282
        %v284 = vsub.s32 4294967266, %v279
        %v285 = vadd.s32 %v284, 127
        %v286 = vshll.u32 %v285, 23
        %v287 = vor.u32 4788187, %v286
        %v288 = vand.u32 2147483647, %v287
        %v290 = vcvt.s32.f32 %v283
        %v291 = vmul.f32 %v290, %v288
        %v292 = vxor.u32 %v291, 2147483648
        %v293 = vsel %vm172, %v292, %v291
        %v294 = vsub.s32 4, %v270
        %v295 = vsel %vm172, %v294, %v270
        %v296 = vsel %vm171, %v167, %v293
        %v297 = vsel %vm171, 0, %v295
        %v298 = vmul.f32 %v296, %v296
        %v299 = vmul.f32 %v298, -0.001358992
        %v300 = vadd.f32 %v299, 0.041655596
        %v301 = vmul.f32 %v298, %v300
        %v302 = vadd.f32 %v301, -0.4999988
        %v303 = vmul.f32 %v298, %v302
        %v304 = vadd.f32 1.0, %v303
        %v305 = vmul.f32 %v296, %v296
        %v306 = vmul.f32 %v305, -0.00019511016
        %v307 = vadd.f32 %v306, 0.008332121
        %v308 = vmul.f32 %v305, %v307
        %v309 = vadd.f32 %v308, -0.16666654
        %v310 = vmul.f32 %v305, %v309
        %v311 = vadd.f32 %v310, 1.0
        %v312 = vmul.f32 %v311, %v296
        %vm313 = vweird.f32 %v167
        %v314 = vadd.s32 %v297, 3
        %v315 = vand.u32 %v314, 3
        %vm316 = vcmp.lt.s32.totalorder %v315, 2
        %vm317 = vcmp.eq.s32.totalorder %v315, 0
        %v318 = vxor.u32 %v312, 2147483648
        %v319 = vsel %vm317, %v304, %v318
        %vm320 = vcmp.eq.s32.totalorder %v315, 2
        %v321 = vxor.u32 %v304, 2147483648
        %v322 = vsel %vm320, %v321, %v312
        %v323 = vsel %vm316, %v319, %v322
        %v324 = vsel %vm313, nan, %v323
        %v325 = vand.u32 2147483647, %v167
        %vm326 = vcmp.le.f32.partialorder %v325, 0.7853982
        %vm327 = vcmp.lt.s32.totalorder %v167, 0
        %v328 = vand.u32 %v167, 2139095040
        %v329 = vshrl.u32 %v328, 23
        %v330 = vsub.s32 %v329, 127
        %v331 = vand.u32 2147483647, %v167
        %v332 = vand.u32 %v331, 8388607
        %v333 = vor.u32 %v332, 8388608
        %v334 = vsub.s32 0, %v333
        %v335 = vadd.s32 %v330, 1
        %vm336 = vcmp.gt.s32.totalorder %v335, 0
        %v337 = vsel %vm336, %v335, 0
        %v338 = vshrl.u32 %v337, 5
        %v339 = vand.u32 %v337, 31
        %v340 = vsub.s32 32, %v339
        %v341 = vshrl.u32 683565275, %v340
        %v342 = vshll.u32 683565275, %v339
        %v343 = vshrl.u32 2475754826, %v340
        %v344 = vor.u32 %v342, %v343
        %v345 = vshll.u32 2475754826, %v339
        %v346 = vshrl.u32 2131351028, %v340
        %v347 = vor.u32 %v345, %v346
        %v348 = vshll.u32 2131351028, %v339
        %v349 = vshrl.u32 2102212464, %v340
        %v350 = vor.u32 %v348, %v349
        %v351 = vshll.u32 2102212464, %v339
        %v352 = vshrl.u32 920167782, %v340
        %v353 = vor.u32 %v351, %v352
        %v354 = vshll.u32 920167782, %v339
        %v355 = vshrl.u32 1326507024, %v340
        %v356 = vor.u32 %v354, %v355
        %vm357 = vcmp.lt.s32.totalorder %v338, 1
        %vm358 = vcmp.lt.s32.totalorder %v338, 2
        %vm359 = vcmp.lt.s32.totalorder %v338, 3
        %vm360 = vcmp.lt.s32.totalorder %v338, 4
        %v361 = vsel %vm357, %v341, %v344
        %v362 = vsel %vm360, %v350, 2102212464
        %v363 = vsel %vm359, %v347, %v362
        %v364 = vsel %vm358, %v361, %v363
        %v365 = vsel %vm357, %v344, %v347
        %v366 = vsel %vm360, %v353, 920167782
        %v367 = vsel %vm359, %v350, %v366
        %v368 = vsel %vm358, %v365, %v367
        %v369 = vsel %vm357, %v347, %v350
        %v370 = vsel %vm360, %v356, 1326507024
        %v371 = vsel %vm359, %v353, %v370
        %v372 = vsel %vm358, %v369, %v371
        %v373 = vshll.u32 %v333, 8
        %v374 = vand.u32 %v373, 65535
        %v375 = vshrl.u32 %v373, 16
        %v376 = vand.u32 %v372, 65535
        %v377 = vshrl.u32 %v372, 16
        %v378 = vmul.u32 %v374, %v376
        %v379 = vmul.u32 %v374, %v377
        %v380 = vmul.u32 %v375, %v376
        %v381 = vmul.u32 %v375, %v377
        %v382 = vshll.u32 %v379, 16
        %v383 = vshrl.u32 %v379, 16
        %v384 = vshll.u32 %v380, 16
        %v385 = vshrl.u32 %v380, 16
        %vm386 = vc.u32 %v378, %v382
        %v387 = vsel %vm386, 1, 0
        %v388 = vadd.s32 %v378, %v382
        %v389 = vadd.s32 %v381, %v387
        %vm390 = vc.u32 %v388, %v384
        %v391 = vsel %vm390, 1, 0
        %v392 = vadd.s32 %v388, %v384
        %v393 = vadd.s32 %v389, %v391
        %v394 = vadd.s32 %v393, %v383
        %v395 = vadd.s32 %v394, %v385
        %v396 = vand.u32 %v373, 65535
        %v397 = vshrl.u32 %v373, 16
        %v398 = vand.u32 %v368, 65535
        %v399 = vshrl.u32 %v368, 16
        %v400 = vmul.u32 %v396, %v398
        %v401 = vmul.u32 %v396, %v399
        %v402 = vmul.u32 %v397, %v398
        %v403 = vmul.u32 %v397, %v399
        %v404 = vshll.u32 %v401, 16
        %v405 = vshrl.u32 %v401, 16
        %v406 = vshll.u32 %v402, 16
        %v407 = vshrl.u32 %v402, 16
        %vm408 = vc.u32 %v400, %v404
        %v409 = vsel %vm408, 1, 0
        %v410 = vadd.s32 %v400, %v404
        %v411 = vadd.s32 %v403, %v409
        %vm412 = vc.u32 %v410, %v406
        %v413 = vsel %vm412, 1, 0
        %v414 = vadd.s32 %v410, %v406
        %v415 = vadd.s32 %v411, %v413
        %v416 = vadd.s32 %v415, %v405
        %v417 = vadd.s32 %v416, %v407
        %v418 = vmul.u32 %v373, %v364
        %v419 = vadd.s32 %v395, %v414
        %vm420 = vc.u32 %v395, %v414
        %v421 = vadd.s32 %v417, 1
        %v422 = vsel %vm420, %v421, %v417
        %v423 = vadd.s32 %v418, %v422
        %v424 = vadd.s32 %v423, 536870912
        %v425 = vshrl.u32 %v424, 30
        %v426 = vshll.u32 %v425, 30
        %v427 = vsub.s32 %v423, %v426
        %vm428 = vcmp.lt.s32.totalorder %v427, 0
        %v429 = vsub.s32 0, %v427
        %v430 = vsel %vm428, %v429, %v427
        %v431 = vclz %v430
        %v432 = vsub.s32 %v431, 2
        %vm433 = vcmp.gt.s32.totalorder 0, %v432
        %v434 = vsel %vm433, 0, %v432
        %v435 = vsub.s32 32, %v434
        %v436 = vshll.u32 %v427, %v434
        %v437 = vshrl.u32 %v419, %v435
        %v438 = vor.u32 %v436, %v437
        %v439 = vsub.s32 4294967266, %v434
        %v440 = vadd.s32 %v439, 127
        %v441 = vshll.u32 %v440, 23
        %v442 = vor.u32 4788187, %v441
        %v443 = vand.u32 2147483647, %v442
        %v445 = vcvt.s32.f32 %v438
        %v446 = vmul.f32 %v445, %v443
        %v447 = vxor.u32 %v446, 2147483648
        %v448 = vsel %vm327, %v447, %v446
        %v449 = vsub.s32 4, %v425
        %v450 = vsel %vm327, %v449, %v425
        %v451 = vsel %vm326, %v167, %v448
        %v452 = vsel %vm326, 0, %v450
        %v453 = vmul.f32 %v451, %v451
        %v454 = vmul.f32 %v453, -0.001358992
        %v455 = vadd.f32 %v454, 0.041655596
        %v456 = vmul.f32 %v453, %v455
        %v457 = vadd.f32 %v456, -0.4999988
        %v458 = vmul.f32 %v453, %v457
        %v459 = vadd.f32 1.0, %v458
        %v460 = vmul.f32 %v451, %v451
        %v461 = vmul.f32 %v460, -0.00019511016
        %v462 = vadd.f32 %v461, 0.008332121
        %v463 = vmul.f32 %v460, %v462
        %v464 = vadd.f32 %v463, -0.16666654
        %v465 = vmul.f32 %v460, %v464
        %v466 = vadd.f32 %v465, 1.0
        %v467 = vmul.f32 %v466, %v451
        %vm468 = vweird.f32 %v167
        %v469 = vand.u32 %v452, 3
        %vm470 = vcmp.lt.s32.totalorder %v469, 2
        %vm471 = vcmp.eq.s32.totalorder %v469, 0
        %v472 = vxor.u32 %v467, 2147483648
        %v473 = vsel %vm471, %v459, %v472
        %vm474 = vcmp.eq.s32.totalorder %v469, 2
        %v475 = vxor.u32 %v459, 2147483648
        %v476 = vsel %vm474, %v475, %v467
        %v477 = vsel %vm470, %v473, %v476
        %v478 = vsel %vm468, nan, %v477
        %v479 = vsel %vm169, 1, 0
        %vm480 = vcmp.eq.s32.totalorder %v479, 1
        %v481 = vsel %vm480, %v324, %v478
        %v482 = vld [vmem:[%s133] sm:$0x3]
        %v483 = vadd.f32 %v482, %v481
        %484 = vst [vmem:[%s152] sm:$0x3] %v483
        %s485 = sand.u32 %s70, 1
        %s486 = scalar_lea.sflag [#allocation6], %s485
        %s487 = sand.u32 %s70, 1
        %s488 = smul.addr %s487, 2
        %s489 = scalar_lea.vmem [#allocation7], %s488
        // Predicated region
        $region29: #{tpu_custom_call.1} parent=23 // pred_check
          %p490 = pneg %p80
        $region30: #{tpu_custom_call.1} parent=23 // pred_check_branch
          %492 = sbr.rel (%p490) target = $region32
        $region31: #{tpu_custom_call.1} parent=23 // pred_region
          %494 = vsyncadd %s486, 0
          %s495 = sadd.s32 %s25, %s24
          %s496 = smul.addr %s495, 2
          %s497 = scalar_lea.hbm %s2, %s496
          %s499 = sshll.u32 %s489, 4
          %s500 = int_to_ptr.vmem [resolvable:$true] %s499
          %s501 = sshll.u32 %s497, 4
          %s502 = int_to_ptr.hbm [resolvable:$true] %s501
          %504 = dma.vmem_to_hbm [thread:$0]  %s500, 32, %s502, %s486
        $region32: #{tpu_custom_call.1} parent=23 // pred_fallthru
          _
      $region24: #{tpu_custom_call.1} parent=5 // pred_fallthru
        _
      %p505 = scmp.le.s32.totalorder 2, %s15
      // Predicated region
      $region33: #{tpu_custom_call.1} parent=5 // pred_check
        %p506 = pneg %p505
      $region34: #{tpu_custom_call.1} parent=5 // pred_check_branch
        %508 = sbr.rel (%p506) target = $region36
      $region35: #{tpu_custom_call.1} parent=5 // pred_region
        %s509 = ssub.s32 %s15, 2
        // Predicated region
        $region37: #{tpu_custom_call.1} parent=35 // pred_check
          %p510 = pneg %p86
        $region38: #{tpu_custom_call.1} parent=35 // pred_check_branch
          %512 = sbr.rel (%p510) target = $region40
        $region39: #{tpu_custom_call.1} parent=35 // pred_region
          %s513 = sand.u32 %s71, 1
          %s514 = scalar_lea.sflag [#allocation6], %s513
          %s515 = sand.u32 %s71, 1
          %s516 = smul.addr %s515, 2
          %s517 = scalar_lea.vmem [#allocation7], %s516
          %519 = dma.done %s514, 32
        $region40: #{tpu_custom_call.1} parent=35 // pred_fallthru
          _
      $region36: #{tpu_custom_call.1} parent=5 // pred_fallthru
        _
    $region6: #{tpu_custom_call.1} parent=1 // loop_footer
      %s19 = sadd.s32 1, %s15
    $region7: #{tpu_custom_call.1} parent=1 // loop_footer_branch
      %14 = sbr.rel target = $region3
    $region8: #{tpu_custom_call.1} parent=1 // loop_exit
      _
    %520 = vsyncpa [#allocation5], 1
    %s521 = scalar_lea.sflag [#allocation5], 1
    %522 = vsyncpa %s521, 1
    %523 = vsyncpa [#allocation6], 1
    %s524 = scalar_lea.sflag [#allocation6], 1
    %525 = vsyncpa %s524, 1

</llo_original>
